<compile_context>
chip_gen: v5e
topology: v5e:2x2
jax: 0.10.0
libtpu: 0.0.40
codegen_flags: <defaults>
</compile_context>

<pallas_src>
import functools

import jax
import jax.numpy as jnp
from jax.experimental import pallas as pl
from jax.experimental.pallas import tpu as pltpu

D_IN, H1, H2, D_OUT = 7, 10, 20, 6
PAD_F = 128        # lane pad for every feature dimension (7/10/20/6 -> 128)
ROW_BLOCK = 8      # samples packed per sublane tile / per grid step


def _mlp_kernel(x_ref, w1_ref, w2_ref, w3_ref, o_ref):
    # Biases are folded into the (augmented) weight matrices; x carries a
    # constant-1 lane that each W_k propagates forward, so the whole MLP is
    # just three MXU matmuls + two ReLUs.
    h = jnp.maximum(
        jnp.dot(x_ref[...], w1_ref[...], preferred_element_type=jnp.float32), 0.0)
    h = jnp.maximum(
        jnp.dot(h, w2_ref[...], preferred_element_type=jnp.float32), 0.0)
    o_ref[...] = jnp.dot(h, w3_ref[...], preferred_element_type=jnp.float32)


def init_params(key):
    """Mirror nn.init.normal_(std=0.1) on weights, zeros on biases.
    Weights stored as (in, out), i.e. transpose of PyTorch's Linear weight."""
    k1, k2, k3 = jax.random.split(key, 3)
    w1 = 0.1 * jax.random.normal(k1, (D_IN, H1), dtype=jnp.float32)
    w2 = 0.1 * jax.random.normal(k2, (H1, H2), dtype=jnp.float32)
    w3 = 0.1 * jax.random.normal(k3, (H2, D_OUT), dtype=jnp.float32)
    b1 = jnp.zeros((H1,), jnp.float32)
    b2 = jnp.zeros((H2,), jnp.float32)
    b3 = jnp.zeros((D_OUT,), jnp.float32)
    return (w1, b1), (w2, b2), (w3, b3)


def prepare_params(params):
    """One-time padding + bias folding (hoisted out of the per-call path).

    Augmented layout (all (128,128) f32):
      W1a[:7, :10]  = w1,  W1a[7, :10]  = b1,  W1a[7, 10]  = 1  (propagate const-1 lane)
      W2a[:10, :20] = w2,  W2a[10, :20] = b2,  W2a[10, 20] = 1
      W3a[:20, :6]  = w3,  W3a[20, :6]  = b3
    The kernel input puts the 7 features in lanes 0..6 and a constant 1 in
    lane 7; all-zero padding rows therefore produce exactly-zero outputs.
    """
    (w1, b1), (w2, b2), (w3, b3) = params

    w1a = jnp.zeros((PAD_F, PAD_F), jnp.float32)
    w1a = w1a.at[:D_IN, :H1].set(w1).at[D_IN, :H1].set(b1).at[D_IN, H1].set(1.0)

    w2a = jnp.zeros((PAD_F, PAD_F), jnp.float32)
    w2a = w2a.at[:H1, :H2].set(w2).at[H1, :H2].set(b2).at[H1, H2].set(1.0)

    w3a = jnp.zeros((PAD_F, PAD_F), jnp.float32)
    w3a = w3a.at[:H2, :D_OUT].set(w3).at[H2, :D_OUT].set(b3)

    return w1a, w2a, w3a


@jax.jit
def mlp_pallas_batched(x, packed):
    """x: (B, 7) f32 rows of cat([y, u]).  Returns (B, 6) f32."""
    w1a, w2a, w3a = packed
    b = x.shape[0]
    b_pad = pl.cdiv(b, ROW_BLOCK) * ROW_BLOCK

    # Pack real samples into the sublane dim; lane 7 = constant-1 bias lane.
    xa = jnp.zeros((b_pad, PAD_F), jnp.float32)
    xa = xa.at[:b, :D_IN].set(x).at[:b, D_IN].set(1.0)

    out = pl.pallas_call(
        _mlp_kernel,
        out_shape=jax.ShapeDtypeStruct((b_pad, PAD_F), jnp.float32),
        grid=(b_pad // ROW_BLOCK,),
        in_specs=[
            pl.BlockSpec((ROW_BLOCK, PAD_F), lambda i: (i, 0)),   # per-step x tile
            pl.BlockSpec((PAD_F, PAD_F), lambda i: (0, 0)),       # weights stay
            pl.BlockSpec((PAD_F, PAD_F), lambda i: (0, 0)),       #   resident in
            pl.BlockSpec((PAD_F, PAD_F), lambda i: (0, 0)),       #   VMEM
        ],
        out_specs=pl.BlockSpec((ROW_BLOCK, PAD_F), lambda i: (i, 0)),
        compiler_params=pltpu.CompilerParams(
            dimension_semantics=("parallel",)),                   # megacore on v7x
    )(xa, w1a, w2a, w3a)

    return out[:b, :D_OUT]


def make_discrete_controller(actions):
    """JAX equivalent of controller(actions) -> discrete_controller(t)."""
    n = actions.shape[0]

    def ctrl(t):
        idx = jnp.round(t).astype(jnp.int32)
        in_range = idx <= (n - 1)
        # PyTorch negative indices wrap from the end (actions[-1] == last).
        wrapped = jnp.where(idx < 0, idx + n, idx)
        # TODO(synk): PyTorch raises for idx < -n; here we clip to 0 instead.
        safe = jnp.clip(wrapped, 0, n - 1)
        return jnp.where(in_range, actions[safe], jnp.float32(0.0))

    return ctrl


def transition_model_forward(t, y, packed, ctrl):
    """forward(t, y) = net(cat([y, controller(t - 1)]))  -> (6,)"""
    u = jnp.reshape(ctrl(t - 1.0), (1,))
    x = jnp.concatenate([y, u], axis=0)[None, :]          # (1, 7)
    return mlp_pallas_batched(x, packed)[0]


def transition_model_forward_batch(ts, ys, packed, ctrl):
    """Evaluate the transition at many (t, y) pairs in ONE pallas_call
    (rollout / ODE-stage fusion: weights DMA'd once, resident across steps)."""
    us = jax.vmap(lambda t: ctrl(t - 1.0))(ts)[:, None]   # (B, 1)
    x = jnp.concatenate([ys, us], axis=1)                 # (B, 7)
    return mlp_pallas_batched(x, packed)


def _reference(x, params):
    (w1, b1), (w2, b2), (w3, b3) = params
    h = jnp.maximum(x @ w1 + b1, 0.0)
    h = jnp.maximum(h @ w2 + b2, 0.0)
    return h @ w3 + b3


if __name__ == "__main__":
    key = jax.random.PRNGKey(0)
    kp, ky, ka, kb = jax.random.split(key, 4)

    params = init_params(kp)
    packed = prepare_params(params)                        # one-time pad + fold

    actions = jax.random.normal(ka, (8,), dtype=jnp.float32)
    ctrl = make_discrete_controller(actions)

    # --- single-sample forward (the literal PyTorch module semantics) ---
    y = jax.random.normal(ky, (6,), dtype=jnp.float32)
    t = jnp.float32(3.0)
    out1 = jax.block_until_ready(transition_model_forward(t, y, packed, ctrl))
    x1 = jnp.concatenate([y, jnp.reshape(ctrl(t - 1.0), (1,))])[None, :]
    ref1 = _reference(x1, params)[0]
    assert out1.shape == (D_OUT,)
    assert jnp.allclose(out1, ref1, atol=1e-5, rtol=1e-5)

    # --- batched rollout-style evaluation: 8 (t, y) pairs, one pallas_call ---
    B = 8
    ts = jnp.arange(B, dtype=jnp.float32)
    ys = jax.random.normal(kb, (B, D_OUT), dtype=jnp.float32)
    out_b = jax.block_until_ready(
        transition_model_forward_batch(ts, ys, packed, ctrl))
    us = jax.vmap(lambda tt: ctrl(tt - 1.0))(ts)[:, None]
    ref_b = _reference(jnp.concatenate([ys, us], axis=1), params)
    assert out_b.shape == (B, D_OUT)
    assert jnp.allclose(out_b, ref_b, atol=1e-5, rtol=1e-5)

    print("KERNEL_OK")
</pallas_src>

<mosaic_0001>
module attributes {stable_mosaic.version = 11 : i64} {
  func.func @_mlp_kernel(%arg0: i32, %arg1: memref<8x128xf32, #tpu.memory_space<vmem>>, %arg2: memref<128x128xf32, #tpu.memory_space<vmem>>, %arg3: memref<128x128xf32, #tpu.memory_space<vmem>>, %arg4: memref<128x128xf32, #tpu.memory_space<vmem>>, %arg5: memref<8x128xf32, #tpu.memory_space<vmem>>) attributes {dimension_semantics = [#tpu.dimension_semantics<parallel>], iteration_bounds = array<i64: 1>, scalar_prefetch = 0 : i64, scratch_operands = 0 : i64, tpu.core_type = #tpu.core_type<tc>, window_params = [{transform_indices = @transform_0, window_bounds = array<i64: 8, 128>}, {pipeline_mode = #tpu.pipeline_mode<synchronous>, transform_indices = @transform_1, window_bounds = array<i64: 128, 128>}, {pipeline_mode = #tpu.pipeline_mode<synchronous>, transform_indices = @transform_2, window_bounds = array<i64: 128, 128>}, {pipeline_mode = #tpu.pipeline_mode<synchronous>, transform_indices = @transform_3, window_bounds = array<i64: 128, 128>}, {transform_indices = @transform_4, window_bounds = array<i64: 8, 128>}]} {
    %c0 = arith.constant 0 : index
    %c0_0 = arith.constant 0 : index
    %0 = vector.load %arg1[%c0, %c0_0] : memref<8x128xf32, #tpu.memory_space<vmem>>, vector<8x128xf32>
    %c0_1 = arith.constant 0 : index
    %c0_2 = arith.constant 0 : index
    %1 = vector.load %arg2[%c0_1, %c0_2] : memref<128x128xf32, #tpu.memory_space<vmem>>, vector<128x128xf32>
    %cst = arith.constant dense<0.000000e+00> : vector<8x128xf32>
    %2 = tpu.matmul %0, %1, %cst {dimension_numbers = #tpu.dot_dimension_numbers<[1], [0], [0], [1], [0, 0, 1, 1], [], []>} : vector<8x128xf32>, vector<128x128xf32>, vector<8x128xf32> -> vector<8x128xf32>
    %cst_3 = arith.constant 0.000000e+00 : f32
    %3 = vector.broadcast %cst_3 : f32 to vector<8x128xf32>
    %4 = arith.maximumf %2, %3 : vector<8x128xf32>
    %c0_4 = arith.constant 0 : index
    %c0_5 = arith.constant 0 : index
    %5 = vector.load %arg3[%c0_4, %c0_5] : memref<128x128xf32, #tpu.memory_space<vmem>>, vector<128x128xf32>
    %cst_6 = arith.constant dense<0.000000e+00> : vector<8x128xf32>
    %6 = tpu.matmul %4, %5, %cst_6 {dimension_numbers = #tpu.dot_dimension_numbers<[1], [0], [0], [1], [0, 0, 1, 1], [], []>} : vector<8x128xf32>, vector<128x128xf32>, vector<8x128xf32> -> vector<8x128xf32>
    %cst_7 = arith.constant 0.000000e+00 : f32
    %7 = vector.broadcast %cst_7 : f32 to vector<8x128xf32>
    %8 = arith.maximumf %6, %7 : vector<8x128xf32>
    %c0_8 = arith.constant 0 : index
    %c0_9 = arith.constant 0 : index
    %9 = vector.load %arg4[%c0_8, %c0_9] : memref<128x128xf32, #tpu.memory_space<vmem>>, vector<128x128xf32>
    %cst_10 = arith.constant dense<0.000000e+00> : vector<8x128xf32>
    %10 = tpu.matmul %8, %9, %cst_10 {dimension_numbers = #tpu.dot_dimension_numbers<[1], [0], [0], [1], [0, 0, 1, 1], [], []>} : vector<8x128xf32>, vector<128x128xf32>, vector<8x128xf32> -> vector<8x128xf32>
    %c0_11 = arith.constant 0 : index
    %c0_12 = arith.constant 0 : index
    %11 = vector.load %arg5[%c0_11, %c0_12] : memref<8x128xf32, #tpu.memory_space<vmem>>, vector<8x128xf32>
    tpu.vector_store %arg5[%c0_11, %c0_12], %10 {strides = array<i32>} : memref<8x128xf32, #tpu.memory_space<vmem>>, vector<8x128xf32>,
    return
  }
  func.func @transform_0(%arg0: i32) -> (i32, i32) {
    %c0_i32 = arith.constant 0 : i32
    %c0_i32_0 = arith.constant 0 : i32
    return %arg0, %c0_i32 : i32, i32
  }
  func.func @transform_1(%arg0: i32) -> (i32, i32) {
    %c0_i32 = arith.constant 0 : i32
    %c0_i32_0 = arith.constant 0 : i32
    %c0_i32_1 = arith.constant 0 : i32
    return %c0_i32, %c0_i32_0 : i32, i32
  }
  func.func @transform_2(%arg0: i32) -> (i32, i32) {
    %c0_i32 = arith.constant 0 : i32
    %c0_i32_0 = arith.constant 0 : i32
    %c0_i32_1 = arith.constant 0 : i32
    return %c0_i32, %c0_i32_0 : i32, i32
  }
  func.func @transform_3(%arg0: i32) -> (i32, i32) {
    %c0_i32 = arith.constant 0 : i32
    %c0_i32_0 = arith.constant 0 : i32
    %c0_i32_1 = arith.constant 0 : i32
    return %c0_i32, %c0_i32_0 : i32, i32
  }
  func.func @transform_4(%arg0: i32) -> (i32, i32) {
    %c0_i32 = arith.constant 0 : i32
    %c0_i32_0 = arith.constant 0 : i32
    return %arg0, %c0_i32 : i32, i32
  }
}

</mosaic_0001>

<llo_original>
// kernel: mlp_pallas_batched.1
$region0: #{mlp_pallas_batched.1}
  #allocation0 [shape = 'u32[]', space=smem, size = 0x4, offset = 0x4, fixed_abs, tag = 'smem constant byte address 0x4 - core index']
  #allocation1 [shape = 'u32[72,128]{1,0:T(1,128)}', space=vmem, size = 0x9000, scoped, tag = 'internal scratch']
  %s0 = inlined_call_operand.vmem [shape: f32[8,128], index: 0, kind: input, shape index: {}]
  %s1 = inlined_call_operand.hbm [shape: f32[128,128], index: 1, kind: input, shape index: {}]
  %s2 = inlined_call_operand.hbm [shape: f32[128,128], index: 2, kind: input, shape index: {}]
  %s3 = inlined_call_operand.hbm [shape: f32[128,128], index: 3, kind: input, shape index: {}]
  %s4 = inlined_call_operand.vmem [shape: f32[8,128], index: 4, kind: output, shape index: {}]
  %s5 = sld [smem:[#allocation0]]
  $region38: #{mlp_pallas_batched.1} parent=0
    _
  %s7 = ssub.s32 1, %s5
  %s8 = scalar_select 0, %s7, %s5
  $region1: #{mlp_pallas_batched.1} parent=0
    #allocation2 [shape = 'u8[65536]{0}', space=vmem, size = 0x10000, scoped, tag = 'input window, operand 1, single buffered']
    #allocation3 [shape = 's32[1]{0}', space=sflag, size = 0x4, scoped, tag = 'scoped memory for mlp_pallas_batched.1']
    #allocation4 [shape = 'u8[65536]{0}', space=vmem, size = 0x10000, scoped, tag = 'input window, operand 2, single buffered']
    #allocation5 [shape = 's32[1]{0}', space=sflag, size = 0x4, scoped, tag = 'scoped memory for mlp_pallas_batched.1']
    #allocation6 [shape = 'u8[65536]{0}', space=vmem, size = 0x10000, scoped, tag = 'input window, operand 3, single buffered']
    %9 = vsyncpa [#allocation3], 0
    %10 = vsyncpa [#allocation5], 0
    // Predicated region
    $region2: #{mlp_pallas_batched.1} parent=1 // pred_check
      _
    $region3: #{mlp_pallas_batched.1} parent=1 // pred_check_branch
      %12 = sbr.rel (0) target = $region5
    $region4: #{mlp_pallas_batched.1} parent=1 // pred_region
      _
    $region5: #{mlp_pallas_batched.1} parent=1 // pred_fallthru
      _
    // Predicated region
    $region6: #{mlp_pallas_batched.1} parent=1 // pred_check
      _
    $region7: #{mlp_pallas_batched.1} parent=1 // pred_check_branch
      %14 = sbr.rel (0) target = $region9
    $region8: #{mlp_pallas_batched.1} parent=1 // pred_region
      %16 = vsyncadd [#allocation3], 0
      %s17 = sshll.u32 %s1, 4
      %s18 = int_to_ptr.hbm [resolvable:$true] %s17
      %s19 = sshll.u32 [#allocation2], 4
      %s20 = int_to_ptr.vmem [resolvable:$true] %s19
      %25 = dma.hbm_to_vmem [thread:$0]  %s18, 2048, %s20, [#allocation3], 128, 128, 8
    $region9: #{mlp_pallas_batched.1} parent=1 // pred_fallthru
      _
    // Predicated region
    $region10: #{mlp_pallas_batched.1} parent=1 // pred_check
      _
    $region11: #{mlp_pallas_batched.1} parent=1 // pred_check_branch
      %27 = sbr.rel (0) target = $region13
    $region12: #{mlp_pallas_batched.1} parent=1 // pred_region
      %29 = vsyncadd [#allocation5], 0
      %s30 = sshll.u32 %s2, 4
      %s31 = int_to_ptr.hbm [resolvable:$true] %s30
      %s32 = sshll.u32 [#allocation4], 4
      %s33 = int_to_ptr.vmem [resolvable:$true] %s32
      %38 = dma.hbm_to_vmem [thread:$0]  %s31, 2048, %s33, [#allocation5], 128, 128, 8
    $region13: #{mlp_pallas_batched.1} parent=1 // pred_fallthru
      _
    // Predicated region
    $region14: #{mlp_pallas_batched.1} parent=1 // pred_check
      _
    $region15: #{mlp_pallas_batched.1} parent=1 // pred_check_branch
      %40 = sbr.rel (0) target = $region17
    $region16: #{mlp_pallas_batched.1} parent=1 // pred_region
      %42 = vsyncadd [#allocation5], 0
      %s43 = sshll.u32 %s3, 4
      %s44 = int_to_ptr.hbm [resolvable:$true] %s43
      %s45 = sshll.u32 [#allocation6], 4
      %s46 = int_to_ptr.vmem [resolvable:$true] %s45
      %51 = dma.hbm_to_vmem [thread:$0]  %s44, 2048, %s46, [#allocation5], 128, 128, 8
    $region17: #{mlp_pallas_batched.1} parent=1 // pred_fallthru
      _
    // Predicated region
    $region18: #{mlp_pallas_batched.1} parent=1 // pred_check
      _
    $region19: #{mlp_pallas_batched.1} parent=1 // pred_check_branch
      %53 = sbr.rel (0) target = $region21
    $region20: #{mlp_pallas_batched.1} parent=1 // pred_region
      %55 = dma.done [#allocation3], 2048
    $region21: #{mlp_pallas_batched.1} parent=1 // pred_fallthru
      _
    // Predicated region
    $region22: #{mlp_pallas_batched.1} parent=1 // pred_check
      _
    $region23: #{mlp_pallas_batched.1} parent=1 // pred_check_branch
      %57 = sbr.rel (0) target = $region25
    $region24: #{mlp_pallas_batched.1} parent=1 // pred_region
      %59 = dma.done [#allocation5], 2048
    $region25: #{mlp_pallas_batched.1} parent=1 // pred_fallthru
      _
    // Predicated region
    $region26: #{mlp_pallas_batched.1} parent=1 // pred_check
      _
    $region27: #{mlp_pallas_batched.1} parent=1 // pred_check_branch
      %61 = sbr.rel (0) target = $region29
    $region28: #{mlp_pallas_batched.1} parent=1 // pred_region
      %63 = dma.done [#allocation5], 2048
    $region29: #{mlp_pallas_batched.1} parent=1 // pred_fallthru
      _
    %v64 = vld [vmem:[%s0] sm:$0xff]
    %v65 = vld [vmem:[#allocation2] sm:$0xff]
    %v66 = vld [vmem:[#allocation2 + $0x8] sm:$0xff]
    %v67 = vld [vmem:[#allocation2 + $0x10] sm:$0xff]
    %v68 = vld [vmem:[#allocation2 + $0x18] sm:$0xff]
    %v69 = vld [vmem:[#allocation2 + $0x20] sm:$0xff]
    %v70 = vld [vmem:[#allocation2 + $0x28] sm:$0xff]
    %v71 = vld [vmem:[#allocation2 + $0x30] sm:$0xff]
    %v72 = vld [vmem:[#allocation2 + $0x38] sm:$0xff]
    %v73 = vld [vmem:[#allocation2 + $0x40] sm:$0xff]
    %v74 = vld [vmem:[#allocation2 + $0x48] sm:$0xff]
    %v75 = vld [vmem:[#allocation2 + $0x50] sm:$0xff]
    %v76 = vld [vmem:[#allocation2 + $0x58] sm:$0xff]
    %v77 = vld [vmem:[#allocation2 + $0x60] sm:$0xff]
    %v78 = vld [vmem:[#allocation2 + $0x68] sm:$0xff]
    %v79 = vld [vmem:[#allocation2 + $0x70] sm:$0xff]
    %v80 = vld [vmem:[#allocation2 + $0x78] sm:$0xff]
    %81 = vmatpush.msra.mxu0 %v80
    %82 = vmatpush.msra.mxu0 %v79
    %83 = vmatpush.msra.mxu0 %v78
    %84 = vmatpush.msra.mxu0 %v77
    %85 = vmatpush.msra.mxu0 %v76
    %86 = vmatpush.msra.mxu0 %v75
    %87 = vmatpush.msra.mxu0 %v74
    %88 = vmatpush.msra.mxu0 %v73
    %89 = vmatpush.msra.mxu0 %v72
    %90 = vmatpush.msra.mxu0 %v71
    %91 = vmatpush.msra.mxu0 %v70
    %92 = vmatpush.msra.mxu0 %v69
    %93 = vmatpush.msra.mxu0 %v68
    %94 = vmatpush.msra.mxu0 %v67
    %95 = vmatpush.msra.mxu0 %v66
    %96 = vmatpush.msra.mxu0 %v65
    %97 = vmatmul.f32.gmra.mxu0 %v64
    %v98 = vpop.f32.mrf.mxu0
    %v99 = vadd.f32 0.0, %v98
    %100 = vdwg.mxu0
    %v101 = vmax.f32 %v99, 0.0
    %v102 = vld [vmem:[#allocation4] sm:$0xff]
    %v103 = vld [vmem:[#allocation4 + $0x8] sm:$0xff]
    %v104 = vld [vmem:[#allocation4 + $0x10] sm:$0xff]
    %v105 = vld [vmem:[#allocation4 + $0x18] sm:$0xff]
    %v106 = vld [vmem:[#allocation4 + $0x20] sm:$0xff]
    %v107 = vld [vmem:[#allocation4 + $0x28] sm:$0xff]
    %v108 = vld [vmem:[#allocation4 + $0x30] sm:$0xff]
    %v109 = vld [vmem:[#allocation4 + $0x38] sm:$0xff]
    %v110 = vld [vmem:[#allocation4 + $0x40] sm:$0xff]
    %v111 = vld [vmem:[#allocation4 + $0x48] sm:$0xff]
    %v112 = vld [vmem:[#allocation4 + $0x50] sm:$0xff]
    %v113 = vld [vmem:[#allocation4 + $0x58] sm:$0xff]
    %v114 = vld [vmem:[#allocation4 + $0x60] sm:$0xff]
    %v115 = vld [vmem:[#allocation4 + $0x68] sm:$0xff]
    %v116 = vld [vmem:[#allocation4 + $0x70] sm:$0xff]
    %v117 = vld [vmem:[#allocation4 + $0x78] sm:$0xff]
    %118 = vmatpush.msra.mxu0 %v117
    %119 = vmatpush.msra.mxu0 %v116
    %120 = vmatpush.msra.mxu0 %v115
    %121 = vmatpush.msra.mxu0 %v114
    %122 = vmatpush.msra.mxu0 %v113
    %123 = vmatpush.msra.mxu0 %v112
    %124 = vmatpush.msra.mxu0 %v111
    %125 = vmatpush.msra.mxu0 %v110
    %126 = vmatpush.msra.mxu0 %v109
    %127 = vmatpush.msra.mxu0 %v108
    %128 = vmatpush.msra.mxu0 %v107
    %129 = vmatpush.msra.mxu0 %v106
    %130 = vmatpush.msra.mxu0 %v105
    %131 = vmatpush.msra.mxu0 %v104
    %132 = vmatpush.msra.mxu0 %v103
    %133 = vmatpush.msra.mxu0 %v102
    %134 = vmatmul.f32.gmra.mxu0 %v101
    %v135 = vpop.f32.mrf.mxu0
    %v136 = vadd.f32 0.0, %v135
    %137 = vdwg.mxu0
    %v138 = vmax.f32 %v136, 0.0
    %v139 = vld [vmem:[#allocation6] sm:$0xff]
    %v140 = vld [vmem:[#allocation6 + $0x8] sm:$0xff]
    %v141 = vld [vmem:[#allocation6 + $0x10] sm:$0xff]
    %v142 = vld [vmem:[#allocation6 + $0x18] sm:$0xff]
    %v143 = vld [vmem:[#allocation6 + $0x20] sm:$0xff]
    %v144 = vld [vmem:[#allocation6 + $0x28] sm:$0xff]
    %v145 = vld [vmem:[#allocation6 + $0x30] sm:$0xff]
    %v146 = vld [vmem:[#allocation6 + $0x38] sm:$0xff]
    %v147 = vld [vmem:[#allocation6 + $0x40] sm:$0xff]
    %v148 = vld [vmem:[#allocation6 + $0x48] sm:$0xff]
    %v149 = vld [vmem:[#allocation6 + $0x50] sm:$0xff]
    %v150 = vld [vmem:[#allocation6 + $0x58] sm:$0xff]
    %v151 = vld [vmem:[#allocation6 + $0x60] sm:$0xff]
    %v152 = vld [vmem:[#allocation6 + $0x68] sm:$0xff]
    %v153 = vld [vmem:[#allocation6 + $0x70] sm:$0xff]
    %v154 = vld [vmem:[#allocation6 + $0x78] sm:$0xff]
    %155 = vmatpush.msra.mxu0 %v154
    %156 = vmatpush.msra.mxu0 %v153
    %157 = vmatpush.msra.mxu0 %v152
    %158 = vmatpush.msra.mxu0 %v151
    %159 = vmatpush.msra.mxu0 %v150
    %160 = vmatpush.msra.mxu0 %v149
    %161 = vmatpush.msra.mxu0 %v148
    %162 = vmatpush.msra.mxu0 %v147
    %163 = vmatpush.msra.mxu0 %v146
    %164 = vmatpush.msra.mxu0 %v145
    %165 = vmatpush.msra.mxu0 %v144
    %166 = vmatpush.msra.mxu0 %v143
    %167 = vmatpush.msra.mxu0 %v142
    %168 = vmatpush.msra.mxu0 %v141
    %169 = vmatpush.msra.mxu0 %v140
    %170 = vmatpush.msra.mxu0 %v139
    %171 = vmatmul.f32.gmra.mxu0 %v138
    %v172 = vpop.f32.mrf.mxu0
    %v173 = vadd.f32 0.0, %v172
    %174 = vdwg.mxu0
    %175 = vst [vmem:[%s4] sm:$0xff] %v173
    // Predicated region
    $region30: #{mlp_pallas_batched.1} parent=1 // pred_check
      _
    $region31: #{mlp_pallas_batched.1} parent=1 // pred_check_branch
      %177 = sbr.rel (0) target = $region33
    $region32: #{mlp_pallas_batched.1} parent=1 // pred_region
      _
    $region33: #{mlp_pallas_batched.1} parent=1 // pred_fallthru
      _
    // Predicated region
    $region34: #{mlp_pallas_batched.1} parent=1 // pred_check
      _
    $region35: #{mlp_pallas_batched.1} parent=1 // pred_check_branch
      %179 = sbr.rel (0) target = $region37
    $region36: #{mlp_pallas_batched.1} parent=1 // pred_region
      _
    $region37: #{mlp_pallas_batched.1} parent=1 // pred_fallthru
      _
    %180 = vsyncpa [#allocation3], 1
    %181 = vsyncpa [#allocation5], 1

</llo_original>
